<compile_context>
chip_gen: v7x
topology: tpu7x:2x2x1
jax: 0.10.0
libtpu: 0.0.40
codegen_flags: <defaults>
</compile_context>

<pallas_src>
import jax
import jax.numpy as jnp
from jax.experimental import pallas as pl
from jax.experimental.pallas import tpu as pltpu

ROW_PACK = 8  # rows packed per MXU "super row" -> 8 * 16 = 128 output lanes


def _round_up(x, m):
    return ((x + m - 1) // m) * m


def _pick_tile(n, target):
    """Row tile: multiple of 64 (so tile//8 is a multiple of 8), <= target."""
    t = min(target, _round_up(n, 64))
    return max(64, (t // 64) * 64)


# ----------------------------------------------------------------------------
# Pallas kernels
# ----------------------------------------------------------------------------

def _packed_linear_kernel(x_ref, w_ref, shift_ref, o_ref):
    # x: (tile/8, 8*K)   w: (8*K, 8*Cout) block-diagonal (BN scale folded in)
    # output block is lane-dense (128 lanes for Cout=16) -> unmasked stores.
    y = jnp.dot(x_ref[...], w_ref[...], preferred_element_type=jnp.float32)
    o_ref[...] = jnp.maximum(y + shift_ref[...], 0.0)


def packed_linear_bn_relu(x, w, scale, shift, *, tile_rows=1024):
    """relu(bn(x @ w)) with BN folded to (w * scale, shift).

    Rows are processed in groups of ROW_PACK=8 through a block-diagonal weight
    so the MXU directly emits a (tile/8, 8*Cout) lane-dense block; the wrapper
    reshapes (free, row-major) back to (N, Cout).
    """
    n, k = x.shape
    cout = w.shape[1]
    tile = _pick_tile(n, tile_rows)
    n_pad = _round_up(n, tile)
    if n_pad != n:
        x = jnp.pad(x, ((0, n_pad - n), (0, 0)))
    xp = x.reshape(n_pad // ROW_PACK, ROW_PACK * k)          # free row-major reshape
    w_eff = w * scale[None, :]                                # fold BN scale
    w2 = jnp.kron(jnp.eye(ROW_PACK, dtype=w.dtype), w_eff).astype(x.dtype)
    shift2 = jnp.tile(shift, ROW_PACK).reshape(1, ROW_PACK * cout).astype(jnp.float32)

    out = pl.pallas_call(
        _packed_linear_kernel,
        out_shape=jax.ShapeDtypeStruct((n_pad // ROW_PACK, ROW_PACK * cout),
                                       jnp.float32),
        grid_spec=pltpu.PrefetchScalarGridSpec(
            num_scalar_prefetch=0,
            grid=(n_pad // tile,),
            in_specs=[
                pl.BlockSpec((tile // ROW_PACK, ROW_PACK * k), lambda i: (i, 0)),
                pl.BlockSpec((ROW_PACK * k, ROW_PACK * cout), lambda i: (0, 0)),
                pl.BlockSpec((1, ROW_PACK * cout), lambda i: (0, 0)),
            ],
            out_specs=pl.BlockSpec((tile // ROW_PACK, ROW_PACK * cout),
                                   lambda i: (i, 0)),
        ),
        compiler_params=pltpu.CompilerParams(dimension_semantics=("parallel",)),
    )(xp, w2, shift2)
    return out.reshape(n_pad, cout)[:n]


def _p2p_pospool_kernel(praw_ref, wp_ref, bp_ref, f_ref, wj_ref, bj_ref,
                        mod_ref, red_ref, o_ref):
    # P2P fc_block: Linear(4,16,bias=False) + BN(folded) + ReLU
    p2p = jnp.dot(praw_ref[...], wp_ref[...], preferred_element_type=jnp.float32)
    p2p = jnp.maximum(p2p + bp_ref[...], 0.0)
    # PosPool projection on sample-packed features (lane = sample*Cout + channel)
    h = jnp.dot(f_ref[...], wj_ref[...], preferred_element_type=jnp.float32)
    h = jnp.maximum(h + bj_ref[...], 0.0)
    # geo / mask / masked-mean normalizer all folded into mod (wrapper-built);
    # sum over samples done as a matmul against stacked identities (no reshape).
    p = h * mod_ref[...].astype(jnp.float32)
    pooled = jnp.dot(p, red_ref[...], preferred_element_type=jnp.float32)
    o_ref[...] = p2p + pooled                                 # FUSION == 'sum'


def p2p_pospool_fused(p_raw, grouped_features, grouped_coords, centers_xyz, mask,
                      w_p2p, scale_p2p, shift_p2p, w_proj, scale_proj, shift_proj,
                      v_size, *, tile_rows=1024):
    """P2P fc_block + PosPool('xyz') + 'sum' fusion in one Pallas kernel."""
    n, ns, c = grouped_features.shape
    cout = w_proj.shape[1]
    lanes = ns * cout                                         # 8 * 16 = 128

    # Geometric modulation built once in the wrapper (cheap XLA), with the mask
    # and 1/clamp(mask.sum,1) folded in so the kernel does a single multiply.
    rel = grouped_coords - centers_xyz[:, None, :]
    dist = jnp.sum(rel * rel, axis=2, keepdims=True)
    normalizer = jnp.array(
        [v_size[0], v_size[1], v_size[2],
         v_size[0] ** 2 + v_size[1] ** 2 + v_size[2] ** 2], jnp.float32)
    geo = jnp.concatenate([rel, dist], axis=2) / normalizer   # (N, ns, 4)
    inv_den = 1.0 / jnp.maximum(jnp.sum(mask, axis=1, keepdims=True), 1.0)
    mod = jnp.tile(geo, (1, 1, cout // 4)) * mask[:, :, None] * inv_den[:, :, None]
    mod = mod.reshape(n, lanes).astype(jnp.bfloat16)

    fpack = grouped_features.reshape(n, ns * c).astype(jnp.bfloat16)
    w_p2p_eff = (w_p2p * scale_p2p[None, :]).astype(jnp.float32)
    b_p2p = shift_p2p.reshape(1, -1).astype(jnp.float32)
    w_proj2 = jnp.kron(jnp.eye(ns, dtype=jnp.float32),
                       w_proj * scale_proj[None, :]).astype(jnp.bfloat16)
    b_proj2 = jnp.tile(shift_proj, ns).reshape(1, -1).astype(jnp.float32)
    red = jnp.tile(jnp.eye(cout, dtype=jnp.float32), (ns, 1))  # (ns*cout, cout)

    tile = _pick_tile(n, tile_rows)
    n_pad = _round_up(n, tile)
    if n_pad != n:
        pad = ((0, n_pad - n), (0, 0))
        p_raw = jnp.pad(p_raw, pad)
        fpack = jnp.pad(fpack, pad)
        mod = jnp.pad(mod, pad)

    out = pl.pallas_call(
        _p2p_pospool_kernel,
        out_shape=jax.ShapeDtypeStruct((n_pad, cout), jnp.float32),
        grid_spec=pltpu.PrefetchScalarGridSpec(
            num_scalar_prefetch=0,
            grid=(n_pad // tile,),
            in_specs=[
                pl.BlockSpec((tile, p_raw.shape[1]), lambda i: (i, 0)),
                pl.BlockSpec((w_p2p_eff.shape[0], cout), lambda i: (0, 0)),
                pl.BlockSpec((1, cout), lambda i: (0, 0)),
                pl.BlockSpec((tile, ns * c), lambda i: (i, 0)),
                pl.BlockSpec((ns * c, lanes), lambda i: (0, 0)),
                pl.BlockSpec((1, lanes), lambda i: (0, 0)),
                pl.BlockSpec((tile, lanes), lambda i: (i, 0)),
                pl.BlockSpec((lanes, cout), lambda i: (0, 0)),
            ],
            out_specs=pl.BlockSpec((tile, cout), lambda i: (i, 0)),
        ),
        compiler_params=pltpu.CompilerParams(dimension_semantics=("parallel",)),
    )(p_raw, w_p2p_eff, b_p2p, fpack, w_proj2, b_proj2, mod, red)
    return out[:n]


# ----------------------------------------------------------------------------
# JAX glue (index building / gathers / coordinate math)
# ----------------------------------------------------------------------------

_CONV_OFFS = jnp.array([(dz, dy, dx) for dz in (-1, 0, 1)
                        for dy in (-1, 0, 1) for dx in (-1, 0, 1)], jnp.int32)


def build_dense_grid(v_indices, batch_size, sparse_shape):
    """Dense [B, Z+2, Y+2, X+2] grid of global voxel ids (-1 empty, 1-cell halo)."""
    z_dim, y_dim, x_dim = sparse_shape
    dense = jnp.full((batch_size, z_dim + 2, y_dim + 2, x_dim + 2), -1, jnp.int32)
    m = v_indices.shape[0]
    dense = dense.at[v_indices[:, 0], v_indices[:, 1] + 1,
                     v_indices[:, 2] + 1, v_indices[:, 3] + 1].set(
                         jnp.arange(m, dtype=jnp.int32))
    return dense


def build_neighbor_table(v_indices, dense):
    """3x3x3 neighbor ids + validity, built once and reused by all conv layers."""
    b = jnp.broadcast_to(v_indices[:, 0][:, None], (v_indices.shape[0], 27))
    z = v_indices[:, 1][:, None] + 1 + _CONV_OFFS[None, :, 0]
    y = v_indices[:, 2][:, None] + 1 + _CONV_OFFS[None, :, 1]
    x = v_indices[:, 3][:, None] + 1 + _CONV_OFFS[None, :, 2]
    nidx = dense[b, z, y, x]                                   # (M, 27)
    valid = nidx >= 0
    return jnp.maximum(nidx, 0), valid


def subm_gather(v_feat, nidx, valid, dtype):
    """Gather 3x3x3 neighbor features -> [M, 27*C] in `dtype` (bf16 halves HBM
    traffic of the expanded tensor). The conv itself is the packed matmul kernel.
    # TODO(synk): move this gather inside the conv kernel (VMEM-resident v_feat)
    # to avoid materializing the 27x-expanded tensor in HBM at all.
    """
    g = v_feat.astype(dtype)[nidx]                             # (M, 27, C)
    g = jnp.where(valid[:, :, None], g, jnp.zeros((), dtype))
    return g.reshape(nidx.shape[0], -1)


def get_v_coords(pc_range, v_size, v_indices):
    v_size_a = jnp.array(v_size, jnp.float32)
    min_r = jnp.array(pc_range[0:3], jnp.float32)
    v_bs = v_indices[:, 0:1].astype(jnp.float32)
    v_xyz = (v_indices[:, jnp.array([3, 2, 1])].astype(jnp.float32) + 0.5) \
        * v_size_a + min_r
    return jnp.concatenate([v_bs, v_xyz], axis=1)


def voxel_point_query(p_coords, dense, pc_range, v_size, num_samples, step):
    """Equivalent of pv_utils voxel_point_query_stack.
    Returns p_map [N, ns] of global voxel ids (0 where invalid) and p_mask [N, ns].
    # TODO(synk): the CUDA hash-table query samples voxels in hash-probe order;
    # here the (2*step+1)^3 neighborhood is scanned sorted by squared distance.
    """
    off_list = sorted(
        [(dz, dy, dx) for dz in range(-step, step + 1)
         for dy in range(-step, step + 1) for dx in range(-step, step + 1)],
        key=lambda o: o[0] ** 2 + o[1] ** 2 + o[2] ** 2)
    offs = jnp.array(off_list[:num_samples], jnp.int32)
    b = p_coords[:, 0].astype(jnp.int32)
    xi = jnp.floor((p_coords[:, 1] - pc_range[0]) / v_size[0]).astype(jnp.int32)
    yi = jnp.floor((p_coords[:, 2] - pc_range[1]) / v_size[1]).astype(jnp.int32)
    zi = jnp.floor((p_coords[:, 3] - pc_range[2]) / v_size[2]).astype(jnp.int32)
    nz = jnp.clip(zi[:, None] + 1 + offs[None, :, 0], 0, dense.shape[1] - 1)
    ny = jnp.clip(yi[:, None] + 1 + offs[None, :, 1], 0, dense.shape[2] - 1)
    nx = jnp.clip(xi[:, None] + 1 + offs[None, :, 2], 0, dense.shape[3] - 1)
    nb = jnp.broadcast_to(b[:, None], nz.shape)
    p_map = dense[nb, nz, ny, nx]
    p_mask = (p_map >= 0).astype(jnp.float32)
    p_map = jnp.maximum(p_map, 0)
    return p_map, p_mask


# ----------------------------------------------------------------------------
# Parameters (deterministic synthetic init; shapes implied by the module)
# ----------------------------------------------------------------------------

def make_params(key):
    ks = jax.random.split(key, 10)

    def lin(k, cin, cout):
        return jax.random.normal(k, (cin, cout), jnp.float32) / jnp.sqrt(
            jnp.float32(cin))

    def bn(k, c):
        k1, k2 = jax.random.split(k)
        gamma = 1.0 + 0.1 * jax.random.normal(k1, (c,), jnp.float32)
        beta = 0.05 * jax.random.normal(k2, (c,), jnp.float32)
        eps = 1e-3
        scale = gamma / jnp.sqrt(1.0 + eps)   # running_mean=0, running_var=1
        shift = beta
        return scale, shift

    return {
        # conv_input: SubMConv3d(4, 16, 3, padding=1) + BN + ReLU
        'conv_in_w': lin(ks[0], 27 * 4, 16), 'conv_in_bn': bn(ks[1], 16),
        # conv1: sp_block(16, 16, 3, subm) = SubMConv3d + BN + ReLU
        'conv1_w': lin(ks[2], 27 * 16, 16), 'conv1_bn': bn(ks[3], 16),
        # V2VModule: one subm block 16 -> 16
        'v2v_w': lin(ks[4], 27 * 16, 16), 'v2v_bn': bn(ks[5], 16),
        # P2PModule: fc_block([4, 16]) = Linear(4,16, bias=False) + BN + ReLU
        'p2p_w': lin(ks[6], 4, 16), 'p2p_bn': bn(ks[7], 16),
        # PosPool proj: fc_block([16, 16])
        'proj_w': lin(ks[8], 16, 16), 'proj_bn': bn(ks[9], 16),
    }


# ----------------------------------------------------------------------------
# Forward pass (single PVBlock2, KERNEL='xyz', FUSION='sum')
# ----------------------------------------------------------------------------

def pv_backbone2_forward(params, voxel_features, voxel_coords, points,
                         batch_size, sparse_shape, pc_range, v_size,
                         num_samples=8, step=1, tile_rows=1024):
    m = voxel_features.shape[0]
    n = points.shape[0]

    # ---- index structures (built once, reused by all three sparse convs) ----
    dense = build_dense_grid(voxel_coords, batch_size, sparse_shape)
    tile_v = _pick_tile(m, tile_rows)
    m_pad = _round_up(m, tile_v)
    vc_pad = jnp.pad(voxel_coords, ((0, m_pad - m), (0, 0)))
    nidx, nvalid = build_neighbor_table(vc_pad, dense)

    tile_p = _pick_tile(n, tile_rows)
    n_pad = _round_up(n, tile_p)
    pts_pad = jnp.pad(points, ((0, n_pad - n), (0, 0)))

    # ---- conv_input + conv1 (sub-manifold sparse convs as packed matmuls) ----
    v_feat = jnp.pad(voxel_features, ((0, m_pad - m), (0, 0)))
    # raw voxel features stay f32 for fidelity; later layers stream bf16
    v_feat = packed_linear_bn_relu(
        subm_gather(v_feat, nidx, nvalid, jnp.float32),
        params['conv_in_w'], *params['conv_in_bn'], tile_rows=tile_v)
    v_feat = packed_linear_bn_relu(
        subm_gather(v_feat, nidx, nvalid, jnp.bfloat16),
        params['conv1_w'], *params['conv1_bn'], tile_rows=tile_v)

    p_coords = pts_pad[:, 0:4]
    p_raw = pts_pad[:, 1:5]
    multi_scale = {'p_features_0': points[:, 1:5]}

    # ---- PVBlock2 ----
    # V2V: one more sub-manifold conv block
    v_feat = packed_linear_bn_relu(
        subm_gather(v_feat, nidx, nvalid, jnp.bfloat16),
        params['v2v_w'], *params['v2v_bn'], tile_rows=tile_v)

    # V2P glue: voxel->point neighbor lookup + gathers (XLA)
    v_coords = get_v_coords(pc_range, v_size, voxel_coords)
    p_map, p_mask = voxel_point_query(p_coords, dense, pc_range, v_size,
                                      num_samples, step)
    grouped_coords = v_coords[p_map][:, :, 1:4]                # gather_stack (coords)
    grouped_features = v_feat[p_map]                           # gather_stack (features)

    # P2P + PosPool('xyz') + fusion('sum') fused in one Pallas kernel
    p_features = p2p_pospool_fused(
        p_raw, grouped_features, grouped_coords, p_coords[:, 1:4], p_mask,
        params['p2p_w'], *params['p2p_bn'],
        params['proj_w'], *params['proj_bn'], v_size, tile_rows=tile_p)[:n]
    multi_scale['p_features_1'] = p_features

    return {
        'encoded_spconv_tensor': (v_feat[:m], voxel_coords),
        'encoded_spconv_tensor_stride': 8,
        'multi_scale_point_features': multi_scale,
    }


# ----------------------------------------------------------------------------
# Example run
# ----------------------------------------------------------------------------

if __name__ == "__main__":
    key = jax.random.PRNGKey(0)
    batch_size = 2
    z_dim, y_dim, x_dim = 9, 16, 16              # sparse_shape (Z, Y, X)
    sparse_shape = (z_dim, y_dim, x_dim)
    pc_range = (0.0, 0.0, 0.0, 1.6, 1.6, 0.9)
    v_size = (0.1, 0.1, 0.1)
    m_per, n_per = 64, 48

    kv, kp, kf, kw = jax.random.split(key, 4)

    # voxel coords: unique occupied cells per batch, [M, 4] = (b, z, y, x)
    coords_list = []
    for b in range(batch_size):
        kb = jax.random.fold_in(kv, b)
        flat = jax.random.permutation(kb, z_dim * y_dim * x_dim)[:m_per]
        z = (flat // (y_dim * x_dim)).astype(jnp.int32)
        y = ((flat % (y_dim * x_dim)) // x_dim).astype(jnp.int32)
        x = (flat % x_dim).astype(jnp.int32)
        bcol = jnp.full((m_per,), b, jnp.int32)
        coords_list.append(jnp.stack([bcol, z, y, x], axis=1))
    voxel_coords = jnp.concatenate(coords_list, axis=0)
    voxel_features = jax.random.normal(kf, (batch_size * m_per, 4), jnp.float32)

    # points: [N, 5] = (b, x, y, z, intensity)
    pts_list = []
    for b in range(batch_size):
        kb = jax.random.fold_in(kp, b)
        u = jax.random.uniform(kb, (n_per, 3), jnp.float32)
        xyz = u * jnp.array([1.5, 1.5, 0.8]) + 0.05
        inten = jax.random.uniform(jax.random.fold_in(kb, 1), (n_per, 1),
                                   jnp.float32)
        bcol = jnp.full((n_per, 1), float(b), jnp.float32)
        pts_list.append(jnp.concatenate([bcol, xyz, inten], axis=1))
    points = jnp.concatenate(pts_list, axis=0)

    params = make_params(kw)
    out = pv_backbone2_forward(params, voxel_features, voxel_coords, points,
                               batch_size, sparse_shape, pc_range, v_size)

    jax.block_until_ready(out['encoded_spconv_tensor'][0])
    jax.block_until_ready(out['multi_scale_point_features']['p_features_1'])
    print("KERNEL_OK")
</pallas_src>

<mosaic_0001>
module attributes {stable_mosaic.version = 11 : i64} {
  func.func @_packed_linear_kernel(%arg0: i32, %arg1: memref<16x864xf32, #tpu.memory_space<vmem>>, %arg2: memref<864x128xf32, #tpu.memory_space<vmem>>, %arg3: memref<1x128xf32, #tpu.memory_space<vmem>>, %arg4: memref<16x128xf32, #tpu.memory_space<vmem>>) attributes {dimension_semantics = [#tpu.dimension_semantics<parallel>], iteration_bounds = array<i64: 1>, scalar_prefetch = 0 : i64, scratch_operands = 0 : i64, tpu.core_type = #tpu.core_type<tc>, window_params = [{transform_indices = @transform_0, window_bounds = array<i64: 16, 864>}, {pipeline_mode = #tpu.pipeline_mode<synchronous>, transform_indices = @transform_1, window_bounds = array<i64: 864, 128>}, {pipeline_mode = #tpu.pipeline_mode<synchronous>, transform_indices = @transform_2, window_bounds = array<i64: 1, 128>}, {transform_indices = @transform_3, window_bounds = array<i64: 16, 128>}]} {
    %c0 = arith.constant 0 : index
    %c0_0 = arith.constant 0 : index
    %0 = vector.load %arg1[%c0, %c0_0] : memref<16x864xf32, #tpu.memory_space<vmem>>, vector<16x864xf32>
    %c0_1 = arith.constant 0 : index
    %c0_2 = arith.constant 0 : index
    %1 = vector.load %arg2[%c0_1, %c0_2] : memref<864x128xf32, #tpu.memory_space<vmem>>, vector<864x128xf32>
    %cst = arith.constant dense<0.000000e+00> : vector<16x128xf32>
    %2 = tpu.matmul %0, %1, %cst {dimension_numbers = #tpu.dot_dimension_numbers<[1], [0], [0], [1], [0, 0, 1, 1], [], []>} : vector<16x864xf32>, vector<864x128xf32>, vector<16x128xf32> -> vector<16x128xf32>
    %c0_3 = arith.constant 0 : index
    %c0_4 = arith.constant 0 : index
    %3 = vector.load %arg3[%c0_3, %c0_4] : memref<1x128xf32, #tpu.memory_space<vmem>>, vector<1x128xf32>
    %4 = vector.broadcast %3 : vector<1x128xf32> to vector<16x128xf32>
    %5 = arith.addf %2, %4 : vector<16x128xf32>
    %cst_5 = arith.constant 0.000000e+00 : f32
    %6 = vector.broadcast %cst_5 : f32 to vector<16x128xf32>
    %7 = arith.maximumf %5, %6 : vector<16x128xf32>
    %c0_6 = arith.constant 0 : index
    %c0_7 = arith.constant 0 : index
    %8 = vector.load %arg4[%c0_6, %c0_7] : memref<16x128xf32, #tpu.memory_space<vmem>>, vector<16x128xf32>
    tpu.vector_store %arg4[%c0_6, %c0_7], %7 {strides = array<i32>} : memref<16x128xf32, #tpu.memory_space<vmem>>, vector<16x128xf32>,
    return
  }
  func.func @transform_0(%arg0: i32) -> (i32, i32) {
    %c0_i32 = arith.constant 0 : i32
    %c0_i32_0 = arith.constant 0 : i32
    return %arg0, %c0_i32 : i32, i32
  }
  func.func @transform_1(%arg0: i32) -> (i32, i32) {
    %c0_i32 = arith.constant 0 : i32
    %c0_i32_0 = arith.constant 0 : i32
    %c0_i32_1 = arith.constant 0 : i32
    return %c0_i32, %c0_i32_0 : i32, i32
  }
  func.func @transform_2(%arg0: i32) -> (i32, i32) {
    %c0_i32 = arith.constant 0 : i32
    %c0_i32_0 = arith.constant 0 : i32
    %c0_i32_1 = arith.constant 0 : i32
    return %c0_i32, %c0_i32_0 : i32, i32
  }
  func.func @transform_3(%arg0: i32) -> (i32, i32) {
    %c0_i32 = arith.constant 0 : i32
    %c0_i32_0 = arith.constant 0 : i32
    return %arg0, %c0_i32 : i32, i32
  }
}

</mosaic_0001>

<llo_original>
// kernel: tpu_custom_call.1
$region0: #{tpu_custom_call.1}
  #allocation0 [shape = 'u32[]', space=smem, size = 0x4, offset = 0x4, fixed_abs, tag = 'smem constant byte address 0x4 - core index']
  #allocation1 [shape = 'u32[144,128]{1,0:T(1,128)}', space=vmem, size = 0x12000, scoped, tag = 'internal scratch']
  %s0 = inlined_call_operand.hbm [shape: f32[16,864], index: 0, kind: input, shape index: {}]
  %s1 = inlined_call_operand.hbm [shape: f32[864,128], index: 1, kind: input, shape index: {}]
  %s2 = inlined_call_operand.vmem [shape: f32[1,128], index: 2, kind: input, shape index: {}]
  %s3 = inlined_call_operand.hbm [shape: f32[16,128], index: 3, kind: output, shape index: {}]
  %s4 = sld [smem:[#allocation0]]
  $region30: #{tpu_custom_call.1} parent=0
    _
  %s6 = ssub.s32 1, %s4
  %s7 = scalar_select 0, %s6, %s4
  $region1: #{tpu_custom_call.1} parent=0
    #allocation2 [shape = 'u8[57344]{0}', space=vmem, size = 0xe000, scoped, tag = 'input window, operand 0, single buffered']
    #allocation3 [shape = 's32[1]{0}', space=sflag, size = 0x4, scoped, tag = 'scoped memory for tpu_custom_call.1']
    #allocation4 [shape = 's32[1]{0}', space=sflag, size = 0x4, scoped, tag = 'scoped memory for tpu_custom_call.1']
    #allocation5 [shape = 'u8[442368]{0}', space=vmem, size = 0x6c000, scoped, tag = 'input window, operand 1, single buffered']
    #allocation6 [shape = 's32[1]{0}', space=sflag, size = 0x4, scoped, tag = 'scoped memory for tpu_custom_call.1']
    #allocation7 [shape = 'u8[8192]{0}', space=vmem, size = 0x2000, scoped, tag = 'output window, operand 0, single buffered']
    %8 = vsyncpa [#allocation3], 0
    %9 = vsyncpa [#allocation6], 0
    %10 = vsyncpa [#allocation4], 0
    // Predicated region
    $region2: #{tpu_custom_call.1} parent=1 // pred_check
      _
    $region3: #{tpu_custom_call.1} parent=1 // pred_check_branch
      %12 = sbr.rel (0) target = $region5
    $region4: #{tpu_custom_call.1} parent=1 // pred_region
      %s14 = ssub.s32 1792, 1792
      %15 = vsyncadd [#allocation3], %s14
      %s16 = sshll.u32 [#allocation2], 4
      %s17 = int_to_ptr.vmem [resolvable:$true] %s16
      %22 = dma.hbm_to_vmem [thread:$0]  %s0, 1792, %s17, [#allocation3], 896, 896, 56
    $region5: #{tpu_custom_call.1} parent=1 // pred_fallthru
      _
    // Predicated region
    $region6: #{tpu_custom_call.1} parent=1 // pred_check
      _
    $region7: #{tpu_custom_call.1} parent=1 // pred_check_branch
      %24 = sbr.rel (0) target = $region9
    $region8: #{tpu_custom_call.1} parent=1 // pred_region
      %s26 = ssub.s32 13824, 13824
      %27 = vsyncadd [#allocation6], %s26
      %s28 = sshll.u32 [#allocation5], 4
      %s29 = int_to_ptr.vmem [resolvable:$true] %s28
      %34 = dma.hbm_to_vmem [thread:$0]  %s1, 13824, %s29, [#allocation6], 128, 128, 8
    $region9: #{tpu_custom_call.1} parent=1 // pred_fallthru
      _
    // Predicated region
    $region10: #{tpu_custom_call.1} parent=1 // pred_check
      _
    $region11: #{tpu_custom_call.1} parent=1 // pred_check_branch
      %36 = sbr.rel (0) target = $region13
    $region12: #{tpu_custom_call.1} parent=1 // pred_region
      _
    $region13: #{tpu_custom_call.1} parent=1 // pred_fallthru
      _
    // Predicated region
    $region14: #{tpu_custom_call.1} parent=1 // pred_check
      _
    $region15: #{tpu_custom_call.1} parent=1 // pred_check_branch
      %38 = sbr.rel (0) target = $region17
    $region16: #{tpu_custom_call.1} parent=1 // pred_region
      %39 = dma.done [#allocation3], 1792
    $region17: #{tpu_custom_call.1} parent=1 // pred_fallthru
      _
    // Predicated region
    $region18: #{tpu_custom_call.1} parent=1 // pred_check
      _
    $region19: #{tpu_custom_call.1} parent=1 // pred_check_branch
      %41 = sbr.rel (0) target = $region21
    $region20: #{tpu_custom_call.1} parent=1 // pred_region
      %42 = dma.done [#allocation6], 13824
    $region21: #{tpu_custom_call.1} parent=1 // pred_fallthru
      _
    %v43 = vld [vmem:[#allocation2] sm:$0xff]
    %v44 = vld [vmem:[#allocation2 + $0x8] sm:$0xff]
    %v45 = vld [vmem:[#allocation2 + $0x10] sm:$0xff]
    %v46 = vld [vmem:[#allocation2 + $0x18] sm:$0xff]
    %v47 = vld [vmem:[#allocation2 + $0x20] sm:$0xff]
    %v48 = vld [vmem:[#allocation2 + $0x28] sm:$0xff]
    %v49 = vld [vmem:[#allocation2 + $0x30] sm:$0xff]
    %v50 = vld [vmem:[#allocation2 + $0x38] sm:$0xff]
    %v51 = vld [vmem:[#allocation2 + $0x40] sm:$0xff]
    %v52 = vld [vmem:[#allocation2 + $0x48] sm:$0xff]
    %v53 = vld [vmem:[#allocation2 + $0x50] sm:$0xff]
    %v54 = vld [vmem:[#allocation2 + $0x58] sm:$0xff]
    %v55 = vld [vmem:[#allocation2 + $0x60] sm:$0xff]
    %v56 = vld [vmem:[#allocation2 + $0x68] sm:$0xff]
    %v57 = vld [vmem:[#allocation5] sm:$0xff]
    %v58 = vld [vmem:[#allocation5 + $0x8] sm:$0xff]
    %v59 = vld [vmem:[#allocation5 + $0x10] sm:$0xff]
    %v60 = vld [vmem:[#allocation5 + $0x18] sm:$0xff]
    %v61 = vld [vmem:[#allocation5 + $0x20] sm:$0xff]
    %v62 = vld [vmem:[#allocation5 + $0x28] sm:$0xff]
    %v63 = vld [vmem:[#allocation5 + $0x30] sm:$0xff]
    %v64 = vld [vmem:[#allocation5 + $0x38] sm:$0xff]
    %v65 = vld [vmem:[#allocation5 + $0x40] sm:$0xff]
    %v66 = vld [vmem:[#allocation5 + $0x48] sm:$0xff]
    %v67 = vld [vmem:[#allocation5 + $0x50] sm:$0xff]
    %v68 = vld [vmem:[#allocation5 + $0x58] sm:$0xff]
    %v69 = vld [vmem:[#allocation5 + $0x60] sm:$0xff]
    %v70 = vld [vmem:[#allocation5 + $0x68] sm:$0xff]
    %v71 = vld [vmem:[#allocation5 + $0x70] sm:$0xff]
    %v72 = vld [vmem:[#allocation5 + $0x78] sm:$0xff]
    %v73 = vld [vmem:[#allocation5 + $0x80] sm:$0xff]
    %v74 = vld [vmem:[#allocation5 + $0x88] sm:$0xff]
    %v75 = vld [vmem:[#allocation5 + $0x90] sm:$0xff]
    %v76 = vld [vmem:[#allocation5 + $0x98] sm:$0xff]
    %v77 = vld [vmem:[#allocation5 + $0xa0] sm:$0xff]
    %v78 = vld [vmem:[#allocation5 + $0xa8] sm:$0xff]
    %v79 = vld [vmem:[#allocation5 + $0xb0] sm:$0xff]
    %v80 = vld [vmem:[#allocation5 + $0xb8] sm:$0xff]
    %v81 = vld [vmem:[#allocation5 + $0xc0] sm:$0xff]
    %v82 = vld [vmem:[#allocation5 + $0xc8] sm:$0xff]
    %v83 = vld [vmem:[#allocation5 + $0xd0] sm:$0xff]
    %v84 = vld [vmem:[#allocation5 + $0xd8] sm:$0xff]
    %v85 = vld [vmem:[#allocation5 + $0xe0] sm:$0xff]
    %v86 = vld [vmem:[#allocation5 + $0xe8] sm:$0xff]
    %v87 = vld [vmem:[#allocation5 + $0xf0] sm:$0xff]
    %v88 = vld [vmem:[#allocation5 + $0xf8] sm:$0xff]
    %v89 = vld [vmem:[#allocation5 + $0x100] sm:$0xff]
    %v90 = vld [vmem:[#allocation5 + $0x108] sm:$0xff]
    %v91 = vld [vmem:[#allocation5 + $0x110] sm:$0xff]
    %v92 = vld [vmem:[#allocation5 + $0x118] sm:$0xff]
    %v93 = vld [vmem:[#allocation5 + $0x120] sm:$0xff]
    %v94 = vld [vmem:[#allocation5 + $0x128] sm:$0xff]
    %v95 = vld [vmem:[#allocation5 + $0x130] sm:$0xff]
    %v96 = vld [vmem:[#allocation5 + $0x138] sm:$0xff]
    %v97 = vld [vmem:[#allocation5 + $0x140] sm:$0xff]
    %v98 = vld [vmem:[#allocation5 + $0x148] sm:$0xff]
    %v99 = vld [vmem:[#allocation5 + $0x150] sm:$0xff]
    %v100 = vld [vmem:[#allocation5 + $0x158] sm:$0xff]
    %v101 = vld [vmem:[#allocation5 + $0x160] sm:$0xff]
    %v102 = vld [vmem:[#allocation5 + $0x168] sm:$0xff]
    %v103 = vld [vmem:[#allocation5 + $0x170] sm:$0xff]
    %v104 = vld [vmem:[#allocation5 + $0x178] sm:$0xff]
    %v105 = vld [vmem:[#allocation5 + $0x180] sm:$0xff]
    %v106 = vld [vmem:[#allocation5 + $0x188] sm:$0xff]
    %v107 = vld [vmem:[#allocation5 + $0x190] sm:$0xff]
    %v108 = vld [vmem:[#allocation5 + $0x198] sm:$0xff]
    %v109 = vld [vmem:[#allocation5 + $0x1a0] sm:$0xff]
    %v110 = vld [vmem:[#allocation5 + $0x1a8] sm:$0xff]
    %v111 = vld [vmem:[#allocation5 + $0x1b0] sm:$0xff]
    %v112 = vld [vmem:[#allocation5 + $0x1b8] sm:$0xff]
    %v113 = vld [vmem:[#allocation5 + $0x1c0] sm:$0xff]
    %v114 = vld [vmem:[#allocation5 + $0x1c8] sm:$0xff]
    %v115 = vld [vmem:[#allocation5 + $0x1d0] sm:$0xff]
    %v116 = vld [vmem:[#allocation5 + $0x1d8] sm:$0xff]
    %v117 = vld [vmem:[#allocation5 + $0x1e0] sm:$0xff]
    %v118 = vld [vmem:[#allocation5 + $0x1e8] sm:$0xff]
    %v119 = vld [vmem:[#allocation5 + $0x1f0] sm:$0xff]
    %v120 = vld [vmem:[#allocation5 + $0x1f8] sm:$0xff]
    %v121 = vld [vmem:[#allocation5 + $0x200] sm:$0xff]
    %v122 = vld [vmem:[#allocation5 + $0x208] sm:$0xff]
    %v123 = vld [vmem:[#allocation5 + $0x210] sm:$0xff]
    %v124 = vld [vmem:[#allocation5 + $0x218] sm:$0xff]
    %v125 = vld [vmem:[#allocation5 + $0x220] sm:$0xff]
    %v126 = vld [vmem:[#allocation5 + $0x228] sm:$0xff]
    %v127 = vld [vmem:[#allocation5 + $0x230] sm:$0xff]
    %v128 = vld [vmem:[#allocation5 + $0x238] sm:$0xff]
    %v129 = vld [vmem:[#allocation5 + $0x240] sm:$0xff]
    %v130 = vld [vmem:[#allocation5 + $0x248] sm:$0xff]
    %v131 = vld [vmem:[#allocation5 + $0x250] sm:$0xff]
    %v132 = vld [vmem:[#allocation5 + $0x258] sm:$0xff]
    %v133 = vld [vmem:[#allocation5 + $0x260] sm:$0xff]
    %v134 = vld [vmem:[#allocation5 + $0x268] sm:$0xff]
    %v135 = vld [vmem:[#allocation5 + $0x270] sm:$0xff]
    %v136 = vld [vmem:[#allocation5 + $0x278] sm:$0xff]
    %v137 = vld [vmem:[#allocation5 + $0x280] sm:$0xff]
    %v138 = vld [vmem:[#allocation5 + $0x288] sm:$0xff]
    %v139 = vld [vmem:[#allocation5 + $0x290] sm:$0xff]
    %v140 = vld [vmem:[#allocation5 + $0x298] sm:$0xff]
    %v141 = vld [vmem:[#allocation5 + $0x2a0] sm:$0xff]
    %v142 = vld [vmem:[#allocation5 + $0x2a8] sm:$0xff]
    %v143 = vld [vmem:[#allocation5 + $0x2b0] sm:$0xff]
    %v144 = vld [vmem:[#allocation5 + $0x2b8] sm:$0xff]
    %v145 = vld [vmem:[#allocation5 + $0x2c0] sm:$0xff]
    %v146 = vld [vmem:[#allocation5 + $0x2c8] sm:$0xff]
    %v147 = vld [vmem:[#allocation5 + $0x2d0] sm:$0xff]
    %v148 = vld [vmem:[#allocation5 + $0x2d8] sm:$0xff]
    %v149 = vld [vmem:[#allocation5 + $0x2e0] sm:$0xff]
    %v150 = vld [vmem:[#allocation5 + $0x2e8] sm:$0xff]
    %v151 = vld [vmem:[#allocation5 + $0x2f0] sm:$0xff]
    %v152 = vld [vmem:[#allocation5 + $0x2f8] sm:$0xff]
    %v153 = vld [vmem:[#allocation5 + $0x300] sm:$0xff]
    %v154 = vld [vmem:[#allocation5 + $0x308] sm:$0xff]
    %v155 = vld [vmem:[#allocation5 + $0x310] sm:$0xff]
    %v156 = vld [vmem:[#allocation5 + $0x318] sm:$0xff]
    %v157 = vld [vmem:[#allocation5 + $0x320] sm:$0xff]
    %v158 = vld [vmem:[#allocation5 + $0x328] sm:$0xff]
    %v159 = vld [vmem:[#allocation5 + $0x330] sm:$0xff]
    %v160 = vld [vmem:[#allocation5 + $0x338] sm:$0xff]
    %v161 = vld [vmem:[#allocation5 + $0x340] sm:$0xff]
    %v162 = vld [vmem:[#allocation5 + $0x348] sm:$0xff]
    %v163 = vld [vmem:[#allocation5 + $0x350] sm:$0xff]
    %v164 = vld [vmem:[#allocation5 + $0x358] sm:$0xff]
    %v165 = vld [vmem:[%s2] sm:$0x1]
    %v167 = vlaneseq
    %v168 = vshrl.u32 %v167, 7
    %v169 = vsub.s32 0, %v168
    %v170 = vrot.slane %v165, %v169
    %vm172 = vcmask 785408
    %v174 = vsel %vm172, %v49, 0
    %v177 = vsel %vm172, %v56, 0
    %179 = vmatprep.subr.mxu0 0.0
    %180 = vmatpush1.msra.mxu0 %v57
    %181 = vmatprep.subr.mxu0 0.0
    %182 = vmatpush1.msra.mxu0 %v58
    %183 = vmatprep.subr.mxu0 0.0
    %184 = vmatpush1.msra.mxu0 %v59
    %185 = vmatprep.subr.mxu0 0.0
    %186 = vmatpush1.msra.mxu0 %v60
    %187 = vmatprep.subr.mxu0 0.0
    %188 = vmatpush1.msra.mxu0 %v61
    %189 = vmatprep.subr.mxu0 0.0
    %190 = vmatpush1.msra.mxu0 %v62
    %191 = vmatprep.subr.mxu0 0.0
    %192 = vmatpush1.msra.mxu0 %v63
    %193 = vmatprep.subr.mxu0 0.0
    %194 = vmatpush1.msra.mxu0 %v64
    %195 = vmatprep.subr.mxu0 0.0
    %196 = vmatpush1.msra.mxu0 %v65
    %197 = vmatprep.subr.mxu0 0.0
    %198 = vmatpush1.msra.mxu0 %v66
    %199 = vmatprep.subr.mxu0 0.0
    %200 = vmatpush1.msra.mxu0 %v67
    %201 = vmatprep.subr.mxu0 0.0
    %202 = vmatpush1.msra.mxu0 %v68
    %203 = vmatprep.subr.mxu0 0.0
    %204 = vmatpush1.msra.mxu0 %v69
    %205 = vmatprep.subr.mxu0 0.0
    %206 = vmatpush1.msra.mxu0 %v70
    %207 = vmatprep.subr.mxu0 0.0
    %208 = vmatpush1.msra.mxu0 %v71
    %209 = vmatprep.subr.mxu0 0.0
    %210 = vmatpush1.msra.mxu0 %v72
    %211 = vmatprep.subr.mxu0 0.0
    %212 = vmatpush1.msra.mxu0 %v73
    %213 = vmatprep.subr.mxu0 0.0
    %214 = vmatpush1.msra.mxu0 %v74
    %215 = vmatprep.subr.mxu0 0.0
    %216 = vmatpush1.msra.mxu0 %v75
    %217 = vmatprep.subr.mxu0 0.0
    %218 = vmatpush1.msra.mxu0 %v76
    %219 = vmatprep.subr.mxu0 0.0
    %220 = vmatpush1.msra.mxu0 %v77
    %221 = vmatprep.subr.mxu0 0.0
    %222 = vmatpush1.msra.mxu0 %v78
    %223 = vmatprep.subr.mxu0 0.0
    %224 = vmatpush1.msra.mxu0 %v79
    %225 = vmatprep.subr.mxu0 0.0
    %226 = vmatpush1.msra.mxu0 %v80
    %227 = vmatprep.subr.mxu0 0.0
    %228 = vmatpush1.msra.mxu0 %v81
    %229 = vmatprep.subr.mxu0 0.0
    %230 = vmatpush1.msra.mxu0 %v82
    %231 = vmatprep.subr.mxu0 0.0
    %232 = vmatpush1.msra.mxu0 %v83
    %233 = vmatprep.subr.mxu0 0.0
    %234 = vmatpush1.msra.mxu0 %v84
    %235 = vmatprep.subr.mxu0 0.0
    %236 = vmatpush1.msra.mxu0 %v85
    %237 = vmatprep.subr.mxu0 0.0
    %238 = vmatpush1.msra.mxu0 %v86
    %239 = vmatprep.subr.mxu0 0.0
    %240 = vmatpush1.msra.mxu0 %v87
    %241 = vmatprep.subr.mxu0 0.0
    %242 = vmatpush1.msra.mxu0 %v88
    %243 = vmatprep.mubr.f32.mxu0 %v44
    %244 = vmatmul.mubr.f32.gmra.mrb[0].mxu0 %v43
    %v245 = vpop.f32.mrb[0].mxu0
    %v246 = vadd.f32 %v170, %v245
    %v247 = vpop.f32.mrb[0].mxu0
    %248 = vmatprep.mubr.f32.mxu0 %v51
    %249 = vmatmul.mubr.f32.gmra.mrb[0].mxu0 %v50
    %v250 = vpop.f32.mrb[0].mxu0
    %v251 = vadd.f32 %v170, %v250
    %v252 = vpop.f32.mrb[0].mxu0
    %253 = vdwg.mxu0
    %254 = vmatprep.subr.mxu0 0.0
    %255 = vmatpush1.msra.mxu0 %v89
    %256 = vmatprep.subr.mxu0 0.0
    %257 = vmatpush1.msra.mxu0 %v90
    %258 = vmatprep.subr.mxu0 0.0
    %259 = vmatpush1.msra.mxu0 %v91
    %260 = vmatprep.subr.mxu0 0.0
    %261 = vmatpush1.msra.mxu0 %v92
    %262 = vmatprep.subr.mxu0 0.0
    %263 = vmatpush1.msra.mxu0 %v93
    %264 = vmatprep.subr.mxu0 0.0
    %265 = vmatpush1.msra.mxu0 %v94
    %266 = vmatprep.subr.mxu0 0.0
    %267 = vmatpush1.msra.mxu0 %v95
    %268 = vmatprep.subr.mxu0 0.0
    %269 = vmatpush1.msra.mxu0 %v96
    %270 = vmatprep.subr.mxu0 0.0
    %271 = vmatpush1.msra.mxu0 %v97
    %272 = vmatprep.subr.mxu0 0.0
    %273 = vmatpush1.msra.mxu0 %v98
    %274 = vmatprep.subr.mxu0 0.0
    %275 = vmatpush1.msra.mxu0 %v99
    %276 = vmatprep.subr.mxu0 0.0
    %277 = vmatpush1.msra.mxu0 %v100
    %278 = vmatprep.subr.mxu0 0.0
    %279 = vmatpush1.msra.mxu0 %v101
    %280 = vmatprep.subr.mxu0 0.0
    %281 = vmatpush1.msra.mxu0 %v102
    %282 = vmatprep.subr.mxu0 0.0
    %283 = vmatpush1.msra.mxu0 %v103
    %284 = vmatprep.subr.mxu0 0.0
    %285 = vmatpush1.msra.mxu0 %v104
    %286 = vmatprep.subr.mxu0 0.0
    %287 = vmatpush1.msra.mxu0 %v105
    %288 = vmatprep.subr.mxu0 0.0
    %289 = vmatpush1.msra.mxu0 %v106
    %290 = vmatprep.subr.mxu0 0.0
    %291 = vmatpush1.msra.mxu0 %v107
    %292 = vmatprep.subr.mxu0 0.0
    %293 = vmatpush1.msra.mxu0 %v108
    %294 = vmatprep.subr.mxu0 0.0
    %295 = vmatpush1.msra.mxu0 %v109
    %296 = vmatprep.subr.mxu0 0.0
    %297 = vmatpush1.msra.mxu0 %v110
    %298 = vmatprep.subr.mxu0 0.0
    %299 = vmatpush1.msra.mxu0 %v111
    %300 = vmatprep.subr.mxu0 0.0
    %301 = vmatpush1.msra.mxu0 %v112
    %302 = vmatprep.subr.mxu0 0.0
    %303 = vmatpush1.msra.mxu0 %v113
    %304 = vmatprep.subr.mxu0 0.0
    %305 = vmatpush1.msra.mxu0 %v114
    %306 = vmatprep.subr.mxu0 0.0
    %307 = vmatpush1.msra.mxu0 %v115
    %308 = vmatprep.subr.mxu0 0.0
    %309 = vmatpush1.msra.mxu0 %v116
    %310 = vmatprep.subr.mxu0 0.0
    %311 = vmatpush1.msra.mxu0 %v117
    %312 = vmatprep.subr.mxu0 0.0
    %313 = vmatpush1.msra.mxu0 %v118
    %314 = vmatprep.subr.mxu0 0.0
    %315 = vmatpush1.msra.mxu0 %v119
    %316 = vmatprep.subr.mxu0 0.0
    %317 = vmatpush1.msra.mxu0 %v120
    %318 = vmatprep.mubr.f32.mxu0 %v46
    %319 = vmatmul.mubr.f32.gmra.mrb[0].mxu0 %v45
    %v320 = vpop.f32.mrb[0].mxu0
    %v321 = vadd.f32 %v246, %v320
    %v322 = vpop.f32.mrb[0].mxu0
    %323 = vmatprep.mubr.f32.mxu0 %v53
    %324 = vmatmul.mubr.f32.gmra.mrb[0].mxu0 %v52
    %v325 = vpop.f32.mrb[0].mxu0
    %v326 = vadd.f32 %v251, %v325
    %v327 = vpop.f32.mrb[0].mxu0
    %328 = vdwg.mxu0
    %329 = vmatprep.subr.mxu0 0.0
    %330 = vmatpush1.msra.mxu0 %v121
    %331 = vmatprep.subr.mxu0 0.0
    %332 = vmatpush1.msra.mxu0 %v122
    %333 = vmatprep.subr.mxu0 0.0
    %334 = vmatpush1.msra.mxu0 %v123
    %335 = vmatprep.subr.mxu0 0.0
    %336 = vmatpush1.msra.mxu0 %v124
    %337 = vmatprep.subr.mxu0 0.0
    %338 = vmatpush1.msra.mxu0 %v125
    %339 = vmatprep.subr.mxu0 0.0
    %340 = vmatpush1.msra.mxu0 %v126
    %341 = vmatprep.subr.mxu0 0.0
    %342 = vmatpush1.msra.mxu0 %v127
    %343 = vmatprep.subr.mxu0 0.0
    %344 = vmatpush1.msra.mxu0 %v128
    %345 = vmatprep.subr.mxu0 0.0
    %346 = vmatpush1.msra.mxu0 %v129
    %347 = vmatprep.subr.mxu0 0.0
    %348 = vmatpush1.msra.mxu0 %v130
    %349 = vmatprep.subr.mxu0 0.0
    %350 = vmatpush1.msra.mxu0 %v131
    %351 = vmatprep.subr.mxu0 0.0
    %352 = vmatpush1.msra.mxu0 %v132
    %353 = vmatprep.subr.mxu0 0.0
    %354 = vmatpush1.msra.mxu0 %v133
    %355 = vmatprep.subr.mxu0 0.0
    %356 = vmatpush1.msra.mxu0 %v134
    %357 = vmatprep.subr.mxu0 0.0
    %358 = vmatpush1.msra.mxu0 %v135
    %359 = vmatprep.subr.mxu0 0.0
    %360 = vmatpush1.msra.mxu0 %v136
    %361 = vmatprep.subr.mxu0 0.0
    %362 = vmatpush1.msra.mxu0 %v137
    %363 = vmatprep.subr.mxu0 0.0
    %364 = vmatpush1.msra.mxu0 %v138
    %365 = vmatprep.subr.mxu0 0.0
    %366 = vmatpush1.msra.mxu0 %v139
    %367 = vmatprep.subr.mxu0 0.0
    %368 = vmatpush1.msra.mxu0 %v140
    %369 = vmatprep.subr.mxu0 0.0
    %370 = vmatpush1.msra.mxu0 %v141
    %371 = vmatprep.subr.mxu0 0.0
    %372 = vmatpush1.msra.mxu0 %v142
    %373 = vmatprep.subr.mxu0 0.0
    %374 = vmatpush1.msra.mxu0 %v143
    %375 = vmatprep.subr.mxu0 0.0
    %376 = vmatpush1.msra.mxu0 %v144
    %377 = vmatprep.subr.mxu0 0.0
    %378 = vmatpush1.msra.mxu0 %v145
    %379 = vmatprep.subr.mxu0 0.0
    %380 = vmatpush1.msra.mxu0 %v146
    %381 = vmatprep.subr.mxu0 0.0
    %382 = vmatpush1.msra.mxu0 %v147
    %383 = vmatprep.subr.mxu0 0.0
    %384 = vmatpush1.msra.mxu0 %v148
    %385 = vmatprep.subr.mxu0 0.0
    %386 = vmatpush1.msra.mxu0 %v149
    %387 = vmatprep.subr.mxu0 0.0
    %388 = vmatpush1.msra.mxu0 %v150
    %389 = vmatprep.subr.mxu0 0.0
    %390 = vmatpush1.msra.mxu0 %v151
    %391 = vmatprep.subr.mxu0 0.0
    %392 = vmatpush1.msra.mxu0 %v152
    %393 = vmatprep.mubr.f32.mxu0 %v48
    %394 = vmatmul.mubr.f32.gmra.mrb[0].mxu0 %v47
    %v395 = vpop.f32.mrb[0].mxu0
    %v396 = vadd.f32 %v321, %v395
    %v397 = vpop.f32.mrb[0].mxu0
    %398 = vmatprep.mubr.f32.mxu0 %v55
    %399 = vmatmul.mubr.f32.gmra.mrb[0].mxu0 %v54
    %v400 = vpop.f32.mrb[0].mxu0
    %v401 = vadd.f32 %v326, %v400
    %v402 = vpop.f32.mrb[0].mxu0
    %403 = vdwg.mxu0
    %404 = vmatprep.subr.mxu0 0.0
    %405 = vmatpush1.msra.mxu0 %v153
    %406 = vmatprep.subr.mxu0 0.0
    %407 = vmatpush1.msra.mxu0 %v154
    %408 = vmatprep.subr.mxu0 0.0
    %409 = vmatpush1.msra.mxu0 %v155
    %410 = vmatprep.subr.mxu0 0.0
    %411 = vmatpush1.msra.mxu0 %v156
    %412 = vmatprep.subr.mxu0 0.0
    %413 = vmatpush1.msra.mxu0 %v157
    %414 = vmatprep.subr.mxu0 0.0
    %415 = vmatpush1.msra.mxu0 %v158
    %416 = vmatprep.subr.mxu0 0.0
    %417 = vmatpush1.msra.mxu0 %v159
    %418 = vmatprep.subr.mxu0 0.0
    %419 = vmatpush1.msra.mxu0 %v160
    %420 = vmatprep.subr.mxu0 0.0
    %421 = vmatpush1.msra.mxu0 %v161
    %422 = vmatprep.subr.mxu0 0.0
    %423 = vmatpush1.msra.mxu0 %v162
    %424 = vmatprep.subr.mxu0 0.0
    %425 = vmatpush1.msra.mxu0 %v163
    %426 = vmatprep.subr.mxu0 0.0
    %427 = vmatpush1.msra.mxu0 %v164
    %428 = vmatprep.subr.mxu0 0.0
    %429 = vmatpush1.msra.mxu0 0.0
    %430 = vmatprep.subr.mxu0 0.0
    %431 = vmatpush1.msra.mxu0 0.0
    %432 = vmatprep.subr.mxu0 0.0
    %433 = vmatpush1.msra.mxu0 0.0
    %434 = vmatprep.subr.mxu0 0.0
    %435 = vmatpush1.msra.mxu0 0.0
    %436 = vmatprep.subr.mxu0 0.0
    %437 = vmatpush1.msra.mxu0 0.0
    %438 = vmatprep.subr.mxu0 0.0
    %439 = vmatpush1.msra.mxu0 0.0
    %440 = vmatprep.subr.mxu0 0.0
    %441 = vmatpush1.msra.mxu0 0.0
    %442 = vmatprep.subr.mxu0 0.0
    %443 = vmatpush1.msra.mxu0 0.0
    %444 = vmatprep.subr.mxu0 0.0
    %445 = vmatpush1.msra.mxu0 0.0
    %446 = vmatprep.subr.mxu0 0.0
    %447 = vmatpush1.msra.mxu0 0.0
    %448 = vmatprep.subr.mxu0 0.0
    %449 = vmatpush1.msra.mxu0 0.0
    %450 = vmatprep.subr.mxu0 0.0
    %451 = vmatpush1.msra.mxu0 0.0
    %452 = vmatprep.subr.mxu0 0.0
    %453 = vmatpush1.msra.mxu0 0.0
    %454 = vmatprep.subr.mxu0 0.0
    %455 = vmatpush1.msra.mxu0 0.0
    %456 = vmatprep.subr.mxu0 0.0
    %457 = vmatpush1.msra.mxu0 0.0
    %458 = vmatprep.subr.mxu0 0.0
    %459 = vmatpush1.msra.mxu0 0.0
    %460 = vmatprep.subr.mxu0 0.0
    %461 = vmatpush1.msra.mxu0 0.0
    %462 = vmatprep.subr.mxu0 0.0
    %463 = vmatpush1.msra.mxu0 0.0
    %464 = vmatprep.subr.mxu0 0.0
    %465 = vmatpush1.msra.mxu0 0.0
    %466 = vmatprep.subr.mxu0 0.0
    %467 = vmatpush1.msra.mxu0 0.0
    %468 = vmatprep.mubr.f32.mxu0 0.0
    %469 = vmatmul.mubr.f32.gmra.mrb[0].mxu0 %v174
    %v470 = vpop.f32.mrb[0].mxu0
    %v471 = vadd.f32 %v396, %v470
    %v472 = vpop.f32.mrb[0].mxu0
    %473 = vmatprep.mubr.f32.mxu0 0.0
    %474 = vmatmul.mubr.f32.gmra.mrb[0].mxu0 %v177
    %v475 = vpop.f32.mrb[0].mxu0
    %v476 = vadd.f32 %v401, %v475
    %v477 = vpop.f32.mrb[0].mxu0
    %478 = vdwg.mxu0
    %v479 = vmax.f32 %v471, 0.0
    %v480 = vmax.f32 %v476, 0.0
    %481 = vst [vmem:[#allocation7] sm:$0xff] %v479
    %482 = vst [vmem:[#allocation7 + $0x8] sm:$0xff] %v480
    // Predicated region
    $region22: #{tpu_custom_call.1} parent=1 // pred_check
      _
    $region23: #{tpu_custom_call.1} parent=1 // pred_check_branch
      %484 = sbr.rel (0) target = $region25
    $region24: #{tpu_custom_call.1} parent=1 // pred_region
      %s486 = ssub.s32 256, 256
      %487 = vsyncadd [#allocation4], %s486
      %s488 = sshll.u32 [#allocation7], 4
      %s489 = int_to_ptr.vmem [resolvable:$true] %s488
      %494 = dma.vmem_to_hbm [thread:$0]  %s489, 256, %s3, [#allocation4], 128, 128, 8
    $region25: #{tpu_custom_call.1} parent=1 // pred_fallthru
      _
    // Predicated region
    $region26: #{tpu_custom_call.1} parent=1 // pred_check
      _
    $region27: #{tpu_custom_call.1} parent=1 // pred_check_branch
      %496 = sbr.rel (0) target = $region29
    $region28: #{tpu_custom_call.1} parent=1 // pred_region
      %497 = dma.done [#allocation4], 256
    $region29: #{tpu_custom_call.1} parent=1 // pred_fallthru
      _
    %498 = vsyncpa [#allocation3], 1
    %499 = vsyncpa [#allocation6], 1
    %500 = vsyncpa [#allocation4], 1

</llo_original>
